<compile_context>
chip_gen: v5e
topology: v5e:2x2
jax: 0.10.0
libtpu: 0.0.40
codegen_flags: <defaults>
</compile_context>

<pallas_src>
import functools

import jax
import jax.numpy as jnp
from jax.experimental import pallas as pl
from jax.experimental.pallas import tpu as pltpu


def gnn_forward_kernel(apa_ref, x_ref, w_ref, aux_ref, emb_ref, pred_ref, *,
                       n_pad, b_pad, compute_dtype):
    """Whole-batch GNN forward; all operands are small lane-dense VMEM tiles.

    apa_ref rows [0:n_pad) = A_hat, rows [n_pad:n_pad+b_pad) = PA = pool @ A_hat.
    w_ref   = stacked (3, P, P) weights W1/W2/W3 (compute dtype).
    aux_ref rows: 0=b1, 1=b2, 2=b3, 3=Wp^T (zero padded), 4=bp broadcast (f32).
    """
    f32 = jnp.float32
    cd = compute_dtype

    a = apa_ref[pl.ds(0, n_pad), :]                     # (Np, Np) compute dtype
    pa = apa_ref[pl.ds(n_pad, b_pad), :]                # (Bp, Np) compute dtype

    b1 = aux_ref[pl.ds(0, 1), :]                        # (1, P) f32
    b2 = aux_ref[pl.ds(1, 1), :]
    b3 = aux_ref[pl.ds(2, 1), :]
    wp = aux_ref[pl.ds(3, 1), :]                        # (1, P) = Wp^T, zero padded
    bp = aux_ref[pl.ds(4, 1), :]                        # (1, P) = bp in every lane

    # Layer 1: GCNConv(input_dim -> hidden) + ReLU (dropout = identity in eval).
    # Reordered to (A @ X) @ W1 since F_in <= hidden.
    ax = jnp.dot(a, x_ref[...], preferred_element_type=f32)
    h = jnp.dot(ax.astype(cd), w_ref[0], preferred_element_type=f32) + b1
    h = jnp.maximum(h, 0.0)

    # Layer 2: GCNConv(hidden -> hidden) + ReLU.
    hw = jnp.dot(h.astype(cd), w_ref[1], preferred_element_type=f32)
    h = jnp.dot(a, hw.astype(cd), preferred_element_type=f32) + b2
    h = jnp.maximum(h, 0.0)

    # Layer 3 fused with global_mean_pool, reassociated: emb = (PA @ h) @ W3 + b3.
    # (Valid because every pool row sums to 1; empty graphs would differ by b3.)
    ph = jnp.dot(pa, h.astype(cd), preferred_element_type=f32)      # (Bp, P)
    emb = jnp.dot(ph.astype(cd), w_ref[2], preferred_element_type=f32) + b3
    emb_ref[...] = emb                                   # (Bp, P) unmasked store

    # Predictor Linear(hidden, 1) on the VPU: pred = rowsum(emb * Wp^T) + bp.
    pred = jnp.sum(emb * wp, axis=-1, keepdims=True)     # (Bp, 1)
    pred_ref[...] = pred + bp                            # lane-dense (Bp, P) slab


def _round_up(v, m):
    return ((v + m - 1) // m) * m


def _pad2(x, rows, cols):
    r, c = x.shape
    return jnp.pad(x, ((0, rows - r), (0, cols - c)))


def ruby_complexity_gnn_forward(a_hat, x, params, pool, *,
                                matmul_dtype=jnp.bfloat16):
    """Wrapper: pad to lane-dense shapes, one pallas_call for the whole batch."""
    n = a_hat.shape[0]
    b = pool.shape[0]
    f_in = x.shape[1]
    hidden = params["w1"].shape[1]

    # bf16 vregs pack [16, 128]: round sublane dims to 16 on the bf16 path.
    sub = 16 if matmul_dtype == jnp.bfloat16 else 8
    np_ = _round_up(n, sub)                  # sublane-aligned node count
    bp_ = _round_up(b, sub)                  # sublane-aligned graph count
    # Shared lane-dense feature dim for x / weights / emb (128-multiple; use
    # 256-multiples for the scaled/tiled version on v6e/v7x).
    p = _round_up(max(f_in, hidden), 128)

    f32 = jnp.float32
    a_f32 = _pad2(a_hat.astype(f32), np_, np_)
    pool_f32 = _pad2(pool.astype(f32), bp_, np_)
    pa_f32 = pool_f32 @ a_f32                # fold pooling into the aggregation

    # Packed big operands, pre-cast to the MXU compute dtype in HBM.
    apa = jnp.concatenate([a_f32, pa_f32], axis=0).astype(matmul_dtype)   # (Np+Bp, Np)
    x_p = _pad2(x.astype(f32), np_, p).astype(matmul_dtype)               # (Np, P)
    w_stack = jnp.stack([_pad2(params["w1"], p, p),
                         _pad2(params["w2"], p, p),
                         _pad2(params["w3"], p, p)]).astype(matmul_dtype)  # (3, P, P)

    # Tiny parameters packed into one (8, P) f32 aux tile (single DMA).
    aux = jnp.zeros((8, p), f32)
    aux = aux.at[0, :hidden].set(params["b1"].reshape(-1))
    aux = aux.at[1, :hidden].set(params["b2"].reshape(-1))
    aux = aux.at[2, :hidden].set(params["b3"].reshape(-1))
    aux = aux.at[3, :hidden].set(params["wp"].reshape(-1))
    aux = aux.at[4, :].set(params["bp"][0, 0])

    inputs = (apa, x_p, w_stack, aux)

    # Advisory cost estimate (reassociated layer-3 math).
    flops = 2 * (np_ * np_ * p + np_ * p * p        # layer 1
                 + np_ * p * p + np_ * np_ * p      # layer 2
                 + bp_ * np_ * p + bp_ * p * p      # pool + layer 3
                 + bp_ * p)                         # predictor
    in_bytes = sum(int(t.size) * t.dtype.itemsize for t in inputs)
    out_bytes = 2 * bp_ * p * 4
    scratch_bytes = 4 * np_ * p * 4                 # f32 intermediates (ax, h, ...)

    # VMEM limit from the actual resident set (2x headroom), clamped to a
    # conservative cross-generation ceiling (v7x has 64 MiB physical VMEM).
    vmem_limit = min(max(2 * (in_bytes + out_bytes + scratch_bytes),
                         4 * 1024 * 1024),
                     48 * 1024 * 1024)

    vmem = pl.BlockSpec(memory_space=pltpu.MemorySpace.VMEM)
    emb_slab, pred_slab = pl.pallas_call(
        functools.partial(gnn_forward_kernel, n_pad=np_, b_pad=bp_,
                          compute_dtype=matmul_dtype),
        out_shape=(jax.ShapeDtypeStruct((bp_, p), f32),
                   jax.ShapeDtypeStruct((bp_, p), f32)),
        in_specs=[vmem] * len(inputs),
        out_specs=(vmem, vmem),
        compiler_params=pltpu.CompilerParams(vmem_limit_bytes=int(vmem_limit)),
        cost_estimate=pl.CostEstimate(flops=int(flops), transcendentals=0,
                                      bytes_accessed=int(in_bytes + out_bytes)),
    )(*inputs)

    emb = emb_slab[:b, :hidden]
    pred = pred_slab[:b, :1]
    return emb, pred


def build_gcn_adjacency(edge_index, num_nodes):
    """Dense D^{-1/2}(A+I)D^{-1/2} from a (2, E) edge list (plain JAX glue).

    Note: .at[].set deduplicates repeated edges (PyG's gcn_norm would sum them).
    """
    src, dst = edge_index[0], edge_index[1]
    adj = jnp.zeros((num_nodes, num_nodes), jnp.float32)
    adj = adj.at[dst, src].set(1.0)                      # message flows src -> dst
    adj = adj + jnp.eye(num_nodes, dtype=jnp.float32)    # self loops
    deg = adj.sum(axis=1)
    dinv = jnp.where(deg > 0, jax.lax.rsqrt(deg), 0.0)
    return dinv[:, None] * adj * dinv[None, :]


def build_mean_pool(batch, num_graphs):
    """(B, N) matrix with 1/|graph_b| in row b for nodes assigned to graph b."""
    onehot = (batch[None, :] == jnp.arange(num_graphs)[:, None]).astype(jnp.float32)
    counts = jnp.maximum(onehot.sum(axis=1, keepdims=True), 1.0)
    return onehot / counts


def init_params(key, input_dim, hidden_dim):
    """Deterministic glorot-ish init matching GCNConv / Linear parameter shapes."""
    ks = jax.random.split(key, 4)

    def glorot(k, fan_in, fan_out):
        scale = jnp.sqrt(6.0 / (fan_in + fan_out))
        return jax.random.uniform(k, (fan_in, fan_out), jnp.float32, -scale, scale)

    return {
        "w1": glorot(ks[0], input_dim, hidden_dim),
        "b1": jnp.zeros((1, hidden_dim), jnp.float32),
        "w2": glorot(ks[1], hidden_dim, hidden_dim),
        "b2": jnp.zeros((1, hidden_dim), jnp.float32),
        "w3": glorot(ks[2], hidden_dim, hidden_dim),
        "b3": jnp.zeros((1, hidden_dim), jnp.float32),
        "wp": glorot(ks[3], hidden_dim, 1),
        "bp": jnp.zeros((1, 1), jnp.float32),
    }


if __name__ == "__main__":
    # Small synthetic AST-like graph batch: 16 nodes, 2 graphs, 8-dim features.
    INPUT_DIM = 8
    HIDDEN_DIM = 32
    NUM_NODES = 16
    NUM_GRAPHS = 2

    key = jax.random.PRNGKey(0)
    k_x, k_p = jax.random.split(key)

    x = jax.random.normal(k_x, (NUM_NODES, INPUT_DIM), jnp.float32)

    # Undirected edges within each graph (nodes 0-7 -> graph 0, 8-15 -> graph 1).
    src = jnp.array([0, 1, 1, 2, 2, 3, 4, 5, 8, 9, 9, 10, 10, 11, 12, 13], jnp.int32)
    dst = jnp.array([1, 0, 2, 1, 3, 2, 5, 4, 9, 8, 10, 9, 11, 10, 13, 12], jnp.int32)
    edge_index = jnp.stack([src, dst])

    batch = jnp.concatenate([jnp.zeros(8, jnp.int32), jnp.ones(8, jnp.int32)])

    a_hat = build_gcn_adjacency(edge_index, NUM_NODES)
    pool = build_mean_pool(batch, NUM_GRAPHS)
    params = init_params(k_p, INPUT_DIM, HIDDEN_DIM)

    # TODO(synk): dropout is modeled as identity (eval mode); training-mode
    # stochastic dropout would use pltpu.prng_seed / prng_random_bits.

    # bf16 MXU path is the production default; f32 path is for the exact check.
    emb16, pred16 = ruby_complexity_gnn_forward(a_hat, x, params, pool,
                                                matmul_dtype=jnp.bfloat16)
    emb32, pred32 = ruby_complexity_gnn_forward(a_hat, x, params, pool,
                                                matmul_dtype=jnp.float32)
    jax.block_until_ready((emb32, pred32, emb16, pred16))

    assert emb32.shape == (NUM_GRAPHS, HIDDEN_DIM)
    assert pred32.shape == (NUM_GRAPHS, 1)
    assert emb16.shape == (NUM_GRAPHS, HIDDEN_DIM)
    assert pred16.shape == (NUM_GRAPHS, 1)

    # Pure-JAX f32 reference of the original module math.
    h = jnp.maximum(a_hat @ (x @ params["w1"]) + params["b1"], 0.0)
    h = jnp.maximum(a_hat @ (h @ params["w2"]) + params["b2"], 0.0)
    h = a_hat @ (h @ params["w3"]) + params["b3"]
    emb_ref = pool @ h
    pred_ref = emb_ref @ params["wp"] + params["bp"]

    assert jnp.allclose(emb32, emb_ref, atol=1e-4, rtol=1e-4)
    assert jnp.allclose(pred32, pred_ref, atol=1e-4, rtol=1e-4)
    # bf16 MXU inputs with f32 accumulation: ~1e-2 relative error expected.
    assert jnp.allclose(emb16, emb_ref, atol=1e-1, rtol=1e-1)
    assert jnp.allclose(pred16, pred_ref, atol=1e-1, rtol=1e-1)

    print("KERNEL_OK")
</pallas_src>

<mosaic_0001>
module attributes {stable_mosaic.version = 11 : i64} {
  func.func @gnn_forward_kernel(%arg0: memref<32x16xbf16, #tpu.memory_space<vmem>>, %arg1: memref<16x128xbf16, #tpu.memory_space<vmem>>, %arg2: memref<3x128x128xbf16, #tpu.memory_space<vmem>>, %arg3: memref<8x128xf32, #tpu.memory_space<vmem>>, %arg4: memref<16x128xf32, #tpu.memory_space<vmem>>, %arg5: memref<16x128xf32, #tpu.memory_space<vmem>>) attributes {dimension_semantics = [], scalar_prefetch = 0 : i64, scratch_operands = 0 : i64, tpu.core_type = #tpu.core_type<tc>} {
    %c0 = arith.constant 0 : index
    %c0_0 = arith.constant 0 : index
    %0 = vector.load %arg0[%c0, %c0_0] : memref<32x16xbf16, #tpu.memory_space<vmem>>, vector<16x16xbf16>
    %c16 = arith.constant 16 : index
    %c0_1 = arith.constant 0 : index
    %1 = vector.load %arg0[%c16, %c0_1] : memref<32x16xbf16, #tpu.memory_space<vmem>>, vector<16x16xbf16>
    %c0_2 = arith.constant 0 : index
    %c0_3 = arith.constant 0 : index
    %2 = vector.load %arg3[%c0_2, %c0_3] : memref<8x128xf32, #tpu.memory_space<vmem>>, vector<1x128xf32>
    %c1 = arith.constant 1 : index
    %c0_4 = arith.constant 0 : index
    %3 = vector.load %arg3[%c1, %c0_4] : memref<8x128xf32, #tpu.memory_space<vmem>>, vector<1x128xf32>
    %c2 = arith.constant 2 : index
    %c0_5 = arith.constant 0 : index
    %4 = vector.load %arg3[%c2, %c0_5] : memref<8x128xf32, #tpu.memory_space<vmem>>, vector<1x128xf32>
    %c3 = arith.constant 3 : index
    %c0_6 = arith.constant 0 : index
    %5 = vector.load %arg3[%c3, %c0_6] : memref<8x128xf32, #tpu.memory_space<vmem>>, vector<1x128xf32>
    %c4 = arith.constant 4 : index
    %c0_7 = arith.constant 0 : index
    %6 = vector.load %arg3[%c4, %c0_7] : memref<8x128xf32, #tpu.memory_space<vmem>>, vector<1x128xf32>
    %c0_8 = arith.constant 0 : index
    %c0_9 = arith.constant 0 : index
    %7 = vector.load %arg1[%c0_8, %c0_9] : memref<16x128xbf16, #tpu.memory_space<vmem>>, vector<16x128xbf16>
    %cst = arith.constant dense<0.000000e+00> : vector<16x128xf32>
    %8 = tpu.matmul %0, %7, %cst {dimension_numbers = #tpu.dot_dimension_numbers<[1], [0], [0], [1], [0, 0, 1, 1], [], []>} : vector<16x16xbf16>, vector<16x128xbf16>, vector<16x128xf32> -> vector<16x128xf32>
    %9 = arith.truncf %8 : vector<16x128xf32> to vector<16x128xbf16>
    %c0_10 = arith.constant 0 : index
    %c0_11 = arith.constant 0 : index
    %c0_12 = arith.constant 0 : index
    %10 = vector.load %arg2[%c0_10, %c0_11, %c0_12] : memref<3x128x128xbf16, #tpu.memory_space<vmem>>, vector<1x128x128xbf16>
    %11 = vector.shape_cast %10 : vector<1x128x128xbf16> to vector<128x128xbf16>
    %cst_13 = arith.constant dense<0.000000e+00> : vector<16x128xf32>
    %12 = tpu.matmul %9, %11, %cst_13 {dimension_numbers = #tpu.dot_dimension_numbers<[1], [0], [0], [1], [0, 0, 1, 1], [], []>} : vector<16x128xbf16>, vector<128x128xbf16>, vector<16x128xf32> -> vector<16x128xf32>
    %13 = vector.broadcast %2 : vector<1x128xf32> to vector<16x128xf32>
    %14 = arith.addf %12, %13 : vector<16x128xf32>
    %cst_14 = arith.constant 0.000000e+00 : f32
    %15 = vector.broadcast %cst_14 : f32 to vector<16x128xf32>
    %16 = arith.maximumf %14, %15 : vector<16x128xf32>
    %17 = arith.truncf %16 : vector<16x128xf32> to vector<16x128xbf16>
    %c1_15 = arith.constant 1 : index
    %c0_16 = arith.constant 0 : index
    %c0_17 = arith.constant 0 : index
    %18 = vector.load %arg2[%c1_15, %c0_16, %c0_17] : memref<3x128x128xbf16, #tpu.memory_space<vmem>>, vector<1x128x128xbf16>
    %19 = vector.shape_cast %18 : vector<1x128x128xbf16> to vector<128x128xbf16>
    %cst_18 = arith.constant dense<0.000000e+00> : vector<16x128xf32>
    %20 = tpu.matmul %17, %19, %cst_18 {dimension_numbers = #tpu.dot_dimension_numbers<[1], [0], [0], [1], [0, 0, 1, 1], [], []>} : vector<16x128xbf16>, vector<128x128xbf16>, vector<16x128xf32> -> vector<16x128xf32>
    %21 = arith.truncf %20 : vector<16x128xf32> to vector<16x128xbf16>
    %cst_19 = arith.constant dense<0.000000e+00> : vector<16x128xf32>
    %22 = tpu.matmul %0, %21, %cst_19 {dimension_numbers = #tpu.dot_dimension_numbers<[1], [0], [0], [1], [0, 0, 1, 1], [], []>} : vector<16x16xbf16>, vector<16x128xbf16>, vector<16x128xf32> -> vector<16x128xf32>
    %23 = vector.broadcast %3 : vector<1x128xf32> to vector<16x128xf32>
    %24 = arith.addf %22, %23 : vector<16x128xf32>
    %cst_20 = arith.constant 0.000000e+00 : f32
    %25 = vector.broadcast %cst_20 : f32 to vector<16x128xf32>
    %26 = arith.maximumf %24, %25 : vector<16x128xf32>
    %27 = arith.truncf %26 : vector<16x128xf32> to vector<16x128xbf16>
    %cst_21 = arith.constant dense<0.000000e+00> : vector<16x128xf32>
    %28 = tpu.matmul %1, %27, %cst_21 {dimension_numbers = #tpu.dot_dimension_numbers<[1], [0], [0], [1], [0, 0, 1, 1], [], []>} : vector<16x16xbf16>, vector<16x128xbf16>, vector<16x128xf32> -> vector<16x128xf32>
    %29 = arith.truncf %28 : vector<16x128xf32> to vector<16x128xbf16>
    %c2_22 = arith.constant 2 : index
    %c0_23 = arith.constant 0 : index
    %c0_24 = arith.constant 0 : index
    %30 = vector.load %arg2[%c2_22, %c0_23, %c0_24] : memref<3x128x128xbf16, #tpu.memory_space<vmem>>, vector<1x128x128xbf16>
    %31 = vector.shape_cast %30 : vector<1x128x128xbf16> to vector<128x128xbf16>
    %cst_25 = arith.constant dense<0.000000e+00> : vector<16x128xf32>
    %32 = tpu.matmul %29, %31, %cst_25 {dimension_numbers = #tpu.dot_dimension_numbers<[1], [0], [0], [1], [0, 0, 1, 1], [], []>} : vector<16x128xbf16>, vector<128x128xbf16>, vector<16x128xf32> -> vector<16x128xf32>
    %33 = vector.broadcast %4 : vector<1x128xf32> to vector<16x128xf32>
    %34 = arith.addf %32, %33 : vector<16x128xf32>
    %c0_26 = arith.constant 0 : index
    %c0_27 = arith.constant 0 : index
    %35 = vector.load %arg4[%c0_26, %c0_27] : memref<16x128xf32, #tpu.memory_space<vmem>>, vector<16x128xf32>
    tpu.vector_store %arg4[%c0_26, %c0_27], %34 {strides = array<i32>} : memref<16x128xf32, #tpu.memory_space<vmem>>, vector<16x128xf32>,
    %36 = vector.broadcast %5 : vector<1x128xf32> to vector<16x128xf32>
    %37 = arith.mulf %34, %36 : vector<16x128xf32>
    %cst_28 = arith.constant dense<0.000000e+00> : vector<16xf32>
    %38 = vector.multi_reduction <add>, %37, %cst_28 [1] : vector<16x128xf32> to vector<16xf32>
    %39 = vector.shape_cast %38 : vector<16xf32> to vector<16x1xf32>
    %40 = vector.broadcast %39 : vector<16x1xf32> to vector<16x128xf32>
    %41 = vector.broadcast %6 : vector<1x128xf32> to vector<16x128xf32>
    %42 = arith.addf %40, %41 : vector<16x128xf32>
    %c0_29 = arith.constant 0 : index
    %c0_30 = arith.constant 0 : index
    %43 = vector.load %arg5[%c0_29, %c0_30] : memref<16x128xf32, #tpu.memory_space<vmem>>, vector<16x128xf32>
    tpu.vector_store %arg5[%c0_29, %c0_30], %42 {strides = array<i32>} : memref<16x128xf32, #tpu.memory_space<vmem>>, vector<16x128xf32>,
    return
  }
}

</mosaic_0001>

<llo_original>
// kernel: tpu_custom_call.1
$region0: #{tpu_custom_call.1}
  #allocation0 [shape = 'u32[]', space=smem, size = 0x4, offset = 0x4, fixed_abs, tag = 'smem constant byte address 0x4 - core index']
  #allocation1 [shape = 'u32[72,128]{1,0:T(1,128)}', space=vmem, size = 0x9000, scoped, tag = 'internal scratch']
  %s0 = inlined_call_operand.vmem [shape: bf16[32,16], index: 0, kind: input, shape index: {}]
  %s1 = inlined_call_operand.vmem [shape: bf16[16,128], index: 1, kind: input, shape index: {}]
  %s2 = inlined_call_operand.hbm [shape: bf16[3,128,128], index: 2, kind: input, shape index: {}]
  %s3 = inlined_call_operand.vmem [shape: f32[8,128], index: 3, kind: input, shape index: {}]
  %s4 = inlined_call_operand.hbm [shape: f32[16,128], index: 4, kind: output, shape index: {0}]
  %s5 = inlined_call_operand.hbm [shape: f32[16,128], index: 5, kind: output, shape index: {1}]
  %6 = xla_tuple %s4, %s5
  %s7 = sld [smem:[#allocation0]]
  $region38: #{tpu_custom_call.1} parent=0
    _
  %s9 = ssub.s32 1, %s7
  %s10 = scalar_select 0, %s9, %s7
  $region1: #{tpu_custom_call.1} parent=0
    #allocation2 [shape = 'u8[98304]{0}', space=vmem, size = 0x18000, scoped, tag = 'input window, operand 2, single buffered']
    #allocation3 [shape = 's32[1]{0}', space=sflag, size = 0x4, scoped, tag = 'scoped memory for tpu_custom_call.1']
    #allocation4 [shape = 's32[1]{0}', space=sflag, size = 0x4, scoped, tag = 'scoped memory for tpu_custom_call.1']
    #allocation5 [shape = 'u8[8192]{0}', space=vmem, size = 0x2000, scoped, tag = 'output window, operand 0, single buffered']
    #allocation6 [shape = 'u8[8192]{0}', space=vmem, size = 0x2000, scoped, tag = 'output window, operand 1, single buffered']
    #allocation7 [shape = 's32[1]{0}', space=sflag, size = 0x4, scoped, tag = 'scoped memory for tpu_custom_call.1']
    %11 = vsyncpa [#allocation3], 0
    %12 = vsyncpa [#allocation4], 0
    %13 = vsyncpa [#allocation7], 0
    // Predicated region
    $region2: #{tpu_custom_call.1} parent=1 // pred_check
      _
    $region3: #{tpu_custom_call.1} parent=1 // pred_check_branch
      %15 = sbr.rel (0) target = $region5
    $region4: #{tpu_custom_call.1} parent=1 // pred_region
      _
    $region5: #{tpu_custom_call.1} parent=1 // pred_fallthru
      _
    // Predicated region
    $region6: #{tpu_custom_call.1} parent=1 // pred_check
      _
    $region7: #{tpu_custom_call.1} parent=1 // pred_check_branch
      %17 = sbr.rel (0) target = $region9
    $region8: #{tpu_custom_call.1} parent=1 // pred_region
      _
    $region9: #{tpu_custom_call.1} parent=1 // pred_fallthru
      _
    // Predicated region
    $region10: #{tpu_custom_call.1} parent=1 // pred_check
      _
    $region11: #{tpu_custom_call.1} parent=1 // pred_check_branch
      %19 = sbr.rel (0) target = $region13
    $region12: #{tpu_custom_call.1} parent=1 // pred_region
      %21 = vsyncadd [#allocation3], 0
      %s22 = sshll.u32 %s2, 4
      %s23 = int_to_ptr.hbm [resolvable:$true] %s22
      %s24 = sshll.u32 [#allocation2], 4
      %s25 = int_to_ptr.vmem [resolvable:$true] %s24
      %30 = dma.hbm_to_vmem [thread:$0]  %s23, 3072, %s25, [#allocation3], 64, 64, 4
    $region13: #{tpu_custom_call.1} parent=1 // pred_fallthru
      _
    // Predicated region
    $region14: #{tpu_custom_call.1} parent=1 // pred_check
      _
    $region15: #{tpu_custom_call.1} parent=1 // pred_check_branch
      %32 = sbr.rel (0) target = $region17
    $region16: #{tpu_custom_call.1} parent=1 // pred_region
      _
    $region17: #{tpu_custom_call.1} parent=1 // pred_fallthru
      _
    // Predicated region
    $region18: #{tpu_custom_call.1} parent=1 // pred_check
      _
    $region19: #{tpu_custom_call.1} parent=1 // pred_check_branch
      %34 = sbr.rel (0) target = $region21
    $region20: #{tpu_custom_call.1} parent=1 // pred_region
      %36 = dma.done [#allocation3], 3072
    $region21: #{tpu_custom_call.1} parent=1 // pred_fallthru
      _
    %v38 = vld [vmem:[%s0] sm:$0xf]
    %v39 = vld [vmem:[%s0 + $0x4] sm:$0xf]
    %v40 = vld [vmem:[%s0 + $0x8] sm:$0xf]
    %v41 = vld [vmem:[%s0 + $0xc] sm:$0xf]
    %v42 = vld [vmem:[%s3] sm:$0x1]
    %v43 = vld [vmem:[%s3 + $0x1] sm:$0x1]
    %v44 = vld [vmem:[%s3 + $0x2] sm:$0x1]
    %v45 = vld [vmem:[%s3 + $0x3] sm:$0x1]
    %v46 = vld [vmem:[%s3 + $0x4] sm:$0x1]
    %v47 = vld [vmem:[%s1] sm:$0xf]
    %v48 = vld [vmem:[%s1 + $0x4] sm:$0xf]
    %v51 = vunpack.c.l.b16 %v38
    %v52 = vunpack.c.l.b16 %v39
    %v53 = vpack.c.b16 %v52, %v51
    %v56 = vunpack.c.l.b16 %v47
    %v57 = vunpack.c.l.b16 %v48
    %v58 = vpack.c.b16 %v57, %v56
    %vm60 = vcmask 130048
    %v62 = vsel %vm60, %v53, 0
    %64 = vmatpush.bf16.msra.mxu0 0
    %65 = vmatpush.bf16.msra.mxu0 0
    %66 = vmatpush.bf16.msra.mxu0 0
    %67 = vmatpush.bf16.msra.mxu0 0
    %68 = vmatpush.bf16.msra.mxu0 0
    %69 = vmatpush.bf16.msra.mxu0 0
    %70 = vmatpush.bf16.msra.mxu0 0
    %71 = vmatpush.bf16.msra.mxu0 %v58
    %72 = vmatmul.bf16.gmra.mxu0 %v62
    %v73 = vpop.f32.mrf.mxu0
    %v74 = vadd.f32 0.0, %v73
    %v75 = vpop.f32.mrf.mxu0
    %v76 = vadd.f32 0.0, %v75
    %77 = vdwg.mxu0
    %v78 = vpack.c.bf16 %v76, %v74
    %v79 = vld [vmem:[#allocation2] sm:$0xf]
    %v80 = vld [vmem:[#allocation2 + $0x4] sm:$0xf]
    %v81 = vld [vmem:[#allocation2 + $0x8] sm:$0xf]
    %v82 = vld [vmem:[#allocation2 + $0xc] sm:$0xf]
    %v83 = vld [vmem:[#allocation2 + $0x10] sm:$0xf]
    %v84 = vld [vmem:[#allocation2 + $0x14] sm:$0xf]
    %v85 = vld [vmem:[#allocation2 + $0x18] sm:$0xf]
    %v86 = vld [vmem:[#allocation2 + $0x1c] sm:$0xf]
    %v87 = vld [vmem:[#allocation2 + $0x20] sm:$0xf]
    %v88 = vld [vmem:[#allocation2 + $0x24] sm:$0xf]
    %v89 = vld [vmem:[#allocation2 + $0x28] sm:$0xf]
    %v90 = vld [vmem:[#allocation2 + $0x2c] sm:$0xf]
    %v91 = vld [vmem:[#allocation2 + $0x30] sm:$0xf]
    %v92 = vld [vmem:[#allocation2 + $0x34] sm:$0xf]
    %v93 = vld [vmem:[#allocation2 + $0x38] sm:$0xf]
    %v94 = vld [vmem:[#allocation2 + $0x3c] sm:$0xf]
    %v95 = vperm.slane %v42, 0
    %v112 = vunpack.c.l.b16 %v79
    %v113 = vunpack.c.l.b16 %v80
    %v114 = vunpack.c.l.b16 %v81
    %v115 = vunpack.c.l.b16 %v82
    %v116 = vunpack.c.l.b16 %v83
    %v117 = vunpack.c.l.b16 %v84
    %v118 = vunpack.c.l.b16 %v85
    %v119 = vunpack.c.l.b16 %v86
    %v120 = vunpack.c.l.b16 %v87
    %v121 = vunpack.c.l.b16 %v88
    %v122 = vunpack.c.l.b16 %v89
    %v123 = vunpack.c.l.b16 %v90
    %v124 = vunpack.c.l.b16 %v91
    %v125 = vunpack.c.l.b16 %v92
    %v126 = vunpack.c.l.b16 %v93
    %v127 = vunpack.c.l.b16 %v94
    %v128 = vpack.c.b16 %v113, %v112
    %v129 = vpack.c.b16 %v115, %v114
    %v130 = vpack.c.b16 %v117, %v116
    %v131 = vpack.c.b16 %v119, %v118
    %v132 = vpack.c.b16 %v121, %v120
    %v133 = vpack.c.b16 %v123, %v122
    %v134 = vpack.c.b16 %v125, %v124
    %v135 = vpack.c.b16 %v127, %v126
    %144 = vmatpush.bf16.msra.mxu0 %v135
    %145 = vmatpush.bf16.msra.mxu0 %v134
    %146 = vmatpush.bf16.msra.mxu0 %v133
    %147 = vmatpush.bf16.msra.mxu0 %v132
    %148 = vmatpush.bf16.msra.mxu0 %v131
    %149 = vmatpush.bf16.msra.mxu0 %v130
    %150 = vmatpush.bf16.msra.mxu0 %v129
    %151 = vmatpush.bf16.msra.mxu0 %v128
    %152 = vmatmul.bf16.gmra.mxu0 %v78
    %v153 = vpop.f32.mrf.mxu0
    %v154 = vadd.f32 %v95, %v153
    %v155 = vpop.f32.mrf.mxu0
    %v156 = vadd.f32 %v95, %v155
    %157 = vdwg.mxu0
    %v158 = vmax.f32 %v154, 0.0
    %v159 = vmax.f32 %v156, 0.0
    %v160 = vpack.c.bf16 %v159, %v158
    %s161 = scalar_lea.vmem [#allocation2], 64
    %v162 = vld [vmem:[%s161] sm:$0xf]
    %v163 = vld [vmem:[%s161 + $0x4] sm:$0xf]
    %v164 = vld [vmem:[%s161 + $0x8] sm:$0xf]
    %v165 = vld [vmem:[%s161 + $0xc] sm:$0xf]
    %v166 = vld [vmem:[%s161 + $0x10] sm:$0xf]
    %v167 = vld [vmem:[%s161 + $0x14] sm:$0xf]
    %v168 = vld [vmem:[%s161 + $0x18] sm:$0xf]
    %v169 = vld [vmem:[%s161 + $0x1c] sm:$0xf]
    %v170 = vld [vmem:[%s161 + $0x20] sm:$0xf]
    %v171 = vld [vmem:[%s161 + $0x24] sm:$0xf]
    %v172 = vld [vmem:[%s161 + $0x28] sm:$0xf]
    %v173 = vld [vmem:[%s161 + $0x2c] sm:$0xf]
    %v174 = vld [vmem:[%s161 + $0x30] sm:$0xf]
    %v175 = vld [vmem:[%s161 + $0x34] sm:$0xf]
    %v176 = vld [vmem:[%s161 + $0x38] sm:$0xf]
    %v177 = vld [vmem:[%s161 + $0x3c] sm:$0xf]
    %v194 = vunpack.c.l.b16 %v162
    %v195 = vunpack.c.l.b16 %v163
    %v196 = vunpack.c.l.b16 %v164
    %v197 = vunpack.c.l.b16 %v165
    %v198 = vunpack.c.l.b16 %v166
    %v199 = vunpack.c.l.b16 %v167
    %v200 = vunpack.c.l.b16 %v168
    %v201 = vunpack.c.l.b16 %v169
    %v202 = vunpack.c.l.b16 %v170
    %v203 = vunpack.c.l.b16 %v171
    %v204 = vunpack.c.l.b16 %v172
    %v205 = vunpack.c.l.b16 %v173
    %v206 = vunpack.c.l.b16 %v174
    %v207 = vunpack.c.l.b16 %v175
    %v208 = vunpack.c.l.b16 %v176
    %v209 = vunpack.c.l.b16 %v177
    %v210 = vpack.c.b16 %v195, %v194
    %v211 = vpack.c.b16 %v197, %v196
    %v212 = vpack.c.b16 %v199, %v198
    %v213 = vpack.c.b16 %v201, %v200
    %v214 = vpack.c.b16 %v203, %v202
    %v215 = vpack.c.b16 %v205, %v204
    %v216 = vpack.c.b16 %v207, %v206
    %v217 = vpack.c.b16 %v209, %v208
    %226 = vmatpush.bf16.msra.mxu0 %v217
    %227 = vmatpush.bf16.msra.mxu0 %v216
    %228 = vmatpush.bf16.msra.mxu0 %v215
    %229 = vmatpush.bf16.msra.mxu0 %v214
    %230 = vmatpush.bf16.msra.mxu0 %v213
    %231 = vmatpush.bf16.msra.mxu0 %v212
    %232 = vmatpush.bf16.msra.mxu0 %v211
    %233 = vmatpush.bf16.msra.mxu0 %v210
    %234 = vmatmul.bf16.gmra.mxu0 %v160
    %v235 = vpop.f32.mrf.mxu0
    %v236 = vadd.f32 0.0, %v235
    %v237 = vpop.f32.mrf.mxu0
    %v238 = vadd.f32 0.0, %v237
    %239 = vdwg.mxu0
    %v240 = vpack.c.bf16 %v238, %v236
    %v241 = vperm.slane %v43, 0
    %242 = vmatpush.bf16.msra.mxu0 0
    %243 = vmatpush.bf16.msra.mxu0 0
    %244 = vmatpush.bf16.msra.mxu0 0
    %245 = vmatpush.bf16.msra.mxu0 0
    %246 = vmatpush.bf16.msra.mxu0 0
    %247 = vmatpush.bf16.msra.mxu0 0
    %248 = vmatpush.bf16.msra.mxu0 0
    %249 = vmatpush.bf16.msra.mxu0 %v240
    %250 = vmatmul.bf16.gmra.mxu0 %v62
    %v251 = vpop.f32.mrf.mxu0
    %v252 = vadd.f32 %v241, %v251
    %v253 = vpop.f32.mrf.mxu0
    %v254 = vadd.f32 %v241, %v253
    %255 = vdwg.mxu0
    %v256 = vmax.f32 %v252, 0.0
    %v257 = vmax.f32 %v254, 0.0
    %v258 = vpack.c.bf16 %v257, %v256
    %v261 = vunpack.c.l.b16 %v40
    %v262 = vunpack.c.l.b16 %v41
    %v263 = vpack.c.b16 %v262, %v261
    %v265 = vsel %vm60, %v263, 0
    %267 = vmatpush.bf16.msra.mxu0 0
    %268 = vmatpush.bf16.msra.mxu0 0
    %269 = vmatpush.bf16.msra.mxu0 0
    %270 = vmatpush.bf16.msra.mxu0 0
    %271 = vmatpush.bf16.msra.mxu0 0
    %272 = vmatpush.bf16.msra.mxu0 0
    %273 = vmatpush.bf16.msra.mxu0 0
    %274 = vmatpush.bf16.msra.mxu0 %v258
    %275 = vmatmul.bf16.gmra.mxu0 %v265
    %v276 = vpop.f32.mrf.mxu0
    %v277 = vadd.f32 0.0, %v276
    %v278 = vpop.f32.mrf.mxu0
    %v279 = vadd.f32 0.0, %v278
    %280 = vdwg.mxu0
    %v281 = vpack.c.bf16 %v279, %v277
    %s282 = scalar_lea.vmem [#allocation2], 128
    %v283 = vld [vmem:[%s282] sm:$0xf]
    %v284 = vld [vmem:[%s282 + $0x4] sm:$0xf]
    %v285 = vld [vmem:[%s282 + $0x8] sm:$0xf]
    %v286 = vld [vmem:[%s282 + $0xc] sm:$0xf]
    %v287 = vld [vmem:[%s282 + $0x10] sm:$0xf]
    %v288 = vld [vmem:[%s282 + $0x14] sm:$0xf]
    %v289 = vld [vmem:[%s282 + $0x18] sm:$0xf]
    %v290 = vld [vmem:[%s282 + $0x1c] sm:$0xf]
    %v291 = vld [vmem:[%s282 + $0x20] sm:$0xf]
    %v292 = vld [vmem:[%s282 + $0x24] sm:$0xf]
    %v293 = vld [vmem:[%s282 + $0x28] sm:$0xf]
    %v294 = vld [vmem:[%s282 + $0x2c] sm:$0xf]
    %v295 = vld [vmem:[%s282 + $0x30] sm:$0xf]
    %v296 = vld [vmem:[%s282 + $0x34] sm:$0xf]
    %v297 = vld [vmem:[%s282 + $0x38] sm:$0xf]
    %v298 = vld [vmem:[%s282 + $0x3c] sm:$0xf]
    %v299 = vperm.slane %v44, 0
    %v316 = vunpack.c.l.b16 %v283
    %v317 = vunpack.c.l.b16 %v284
    %v318 = vunpack.c.l.b16 %v285
    %v319 = vunpack.c.l.b16 %v286
    %v320 = vunpack.c.l.b16 %v287
    %v321 = vunpack.c.l.b16 %v288
    %v322 = vunpack.c.l.b16 %v289
    %v323 = vunpack.c.l.b16 %v290
    %v324 = vunpack.c.l.b16 %v291
    %v325 = vunpack.c.l.b16 %v292
    %v326 = vunpack.c.l.b16 %v293
    %v327 = vunpack.c.l.b16 %v294
    %v328 = vunpack.c.l.b16 %v295
    %v329 = vunpack.c.l.b16 %v296
    %v330 = vunpack.c.l.b16 %v297
    %v331 = vunpack.c.l.b16 %v298
    %v332 = vpack.c.b16 %v317, %v316
    %v333 = vpack.c.b16 %v319, %v318
    %v334 = vpack.c.b16 %v321, %v320
    %v335 = vpack.c.b16 %v323, %v322
    %v336 = vpack.c.b16 %v325, %v324
    %v337 = vpack.c.b16 %v327, %v326
    %v338 = vpack.c.b16 %v329, %v328
    %v339 = vpack.c.b16 %v331, %v330
    %348 = vmatpush.bf16.msra.mxu0 %v339
    %349 = vmatpush.bf16.msra.mxu0 %v338
    %350 = vmatpush.bf16.msra.mxu0 %v337
    %351 = vmatpush.bf16.msra.mxu0 %v336
    %352 = vmatpush.bf16.msra.mxu0 %v335
    %353 = vmatpush.bf16.msra.mxu0 %v334
    %354 = vmatpush.bf16.msra.mxu0 %v333
    %355 = vmatpush.bf16.msra.mxu0 %v332
    %356 = vmatmul.bf16.gmra.mxu0 %v281
    %v357 = vpop.f32.mrf.mxu0
    %v358 = vadd.f32 %v299, %v357
    %v359 = vpop.f32.mrf.mxu0
    %v360 = vadd.f32 %v299, %v359
    %361 = vdwg.mxu0
    %362 = vst [vmem:[#allocation5] sm:$0xff] %v358
    %363 = vst [vmem:[#allocation5 + $0x8] sm:$0xff] %v360
    %v364 = vperm.slane %v45, 0
    %v365 = vmul.f32 %v358, %v364
    %v366 = vmul.f32 %v360, %v364
    %367 = vadd.xlane.f32.xlu0 %v365
    %v368 = vpop.xlane.xlu0 %367
    %369 = vadd.xlane.f32.xlu0 %v366
    %v370 = vpop.xlane.xlu0 %369
    %v371 = vperm.slane %v46, 0
    %v372 = vadd.f32 %v368, %v371
    %v373 = vadd.f32 %v370, %v371
    %374 = vst [vmem:[#allocation6] sm:$0xff] %v372
    %375 = vst [vmem:[#allocation6 + $0x8] sm:$0xff] %v373
    // Predicated region
    $region22: #{tpu_custom_call.1} parent=1 // pred_check
      _
    $region23: #{tpu_custom_call.1} parent=1 // pred_check_branch
      %377 = sbr.rel (0) target = $region25
    $region24: #{tpu_custom_call.1} parent=1 // pred_region
      %379 = vsyncadd [#allocation4], 0
      %s380 = sshll.u32 [#allocation5], 4
      %s381 = int_to_ptr.vmem [resolvable:$true] %s380
      %s382 = sshll.u32 %s4, 4
      %s383 = int_to_ptr.hbm [resolvable:$true] %s382
      %388 = dma.vmem_to_hbm [thread:$0]  %s381, 256, %s383, [#allocation4], 128, 128, 8
    $region25: #{tpu_custom_call.1} parent=1 // pred_fallthru
      _
    // Predicated region
    $region26: #{tpu_custom_call.1} parent=1 // pred_check
      _
    $region27: #{tpu_custom_call.1} parent=1 // pred_check_branch
      %390 = sbr.rel (0) target = $region29
    $region28: #{tpu_custom_call.1} parent=1 // pred_region
      %392 = vsyncadd [#allocation7], 0
      %s393 = sshll.u32 [#allocation6], 4
      %s394 = int_to_ptr.vmem [resolvable:$true] %s393
      %s395 = sshll.u32 %s5, 4
      %s396 = int_to_ptr.hbm [resolvable:$true] %s395
      %401 = dma.vmem_to_hbm [thread:$0]  %s394, 256, %s396, [#allocation7], 128, 128, 8
    $region29: #{tpu_custom_call.1} parent=1 // pred_fallthru
      _
    // Predicated region
    $region30: #{tpu_custom_call.1} parent=1 // pred_check
      _
    $region31: #{tpu_custom_call.1} parent=1 // pred_check_branch
      %403 = sbr.rel (0) target = $region33
    $region32: #{tpu_custom_call.1} parent=1 // pred_region
      %405 = dma.done [#allocation4], 256
    $region33: #{tpu_custom_call.1} parent=1 // pred_fallthru
      _
    // Predicated region
    $region34: #{tpu_custom_call.1} parent=1 // pred_check
      _
    $region35: #{tpu_custom_call.1} parent=1 // pred_check_branch
      %407 = sbr.rel (0) target = $region37
    $region36: #{tpu_custom_call.1} parent=1 // pred_region
      %409 = dma.done [#allocation7], 256
    $region37: #{tpu_custom_call.1} parent=1 // pred_fallthru
      _
    %410 = vsyncpa [#allocation3], 1
    %411 = vsyncpa [#allocation4], 1
    %412 = vsyncpa [#allocation7], 1

</llo_original>
